<compile_context>
chip_gen: v7x
topology: tpu7x:2x2x1
jax: 0.10.0
libtpu: 0.0.40
codegen_flags: <defaults>
</compile_context>

<pallas_src>
import jax
import jax.numpy as jnp
from jax import lax
from jax.experimental import pallas as pl
from jax.experimental.pallas import tpu as pltpu


def _round_up(x, m):
    return ((x + m - 1) // m) * m


def _pick_tile(dim_pad, cap):
    """Largest multiple of 128 that divides dim_pad and is <= cap (min 128)."""
    best = 128
    t = 128
    limit = min(dim_pad, cap)
    while t <= limit:
        if dim_pad % t == 0:
            best = t
        t += 128
    return best


def _vmem_bytes(tm, tn, tk):
    # double-buffered x, 3 double-buffered weight streams, implicit temp for the
    # fused w, resident/double-buffered output tile, tiny bias slab (all f32).
    return 4 * (2 * tm * tk + 3 * 2 * tn * tk + tn * tk + 2 * tm * tn + 2 * 3 * tn)


_VMEM_BUDGET = 28 * 1024 * 1024   # fits inside v7x's 64 MiB physical with headroom


def noisy_linear_kernel(x_ref, mu_w_ref, sig_w_ref, eps_w_ref, b_ref, o_ref):
    k = pl.program_id(2)

    @pl.when(k == 0)
    def _():
        o_ref[...] = jnp.zeros_like(o_ref)

    # Fuse noisy-weight construction (VPU elementwise) with the MXU matmul.
    # Contract on the shared in_features axis of both operands (trans-B), so the
    # (out, in) weight tile feeds the MXU directly -- no XLU transpose.
    w = mu_w_ref[...] + sig_w_ref[...] * eps_w_ref[...]            # (tn, tk) f32
    o_ref[...] += lax.dot_general(
        x_ref[...], w,
        dimension_numbers=(((1,), (1,)), ((), ())),
        preferred_element_type=jnp.float32)

    @pl.when(k == pl.num_programs(2) - 1)
    def _():
        # Fused (3, tn) bias slab: row 0 = mu_b, 1 = sigma_b, 2 = eps_b.
        o_ref[...] += b_ref[0:1, :] + b_ref[1:2, :] * b_ref[2:3, :]


def prepare_noisy_params(mu_w, sig_w, eps_w, mu_b, sig_b, eps_b):
    """Pad parameters to lane/sublane-aligned shapes and fuse the biases into
    one (3, N_pad) slab.  Call once at init / sample_noise() time, NOT per
    forward — this keeps the per-call HBM traffic to a single pass over the
    three weight streams."""
    out_f, in_f = mu_w.shape
    n_pad = _round_up(out_f, 128)   # weight sublane + output/bias lane dim
    k_pad = _round_up(in_f, 128)    # x / weight lane dim

    f32 = jnp.float32
    mu_w, sig_w, eps_w = (a.astype(f32) for a in (mu_w, sig_w, eps_w))
    pad_w = ((0, n_pad - out_f), (0, k_pad - in_f))
    if pad_w != ((0, 0), (0, 0)):
        mu_w = jnp.pad(mu_w, pad_w)
        sig_w = jnp.pad(sig_w, pad_w)
        eps_w = jnp.pad(eps_w, pad_w)

    bias_slab = jnp.stack([mu_b.astype(f32), sig_b.astype(f32),
                           eps_b.astype(f32)], axis=0)
    if n_pad != out_f:
        bias_slab = jnp.pad(bias_slab, ((0, 0), (0, n_pad - out_f)))

    return (mu_w, sig_w, eps_w, bias_slab), (out_f, in_f)


def independent_noisy_forward(x, prepared_params, dims):
    """Training-mode forward. x: (batch, in_features); returns (batch, out)."""
    mu_w_p, sig_w_p, eps_w_p, bias_p = prepared_params
    out_features, in_features = dims
    n_pad, k_pad = mu_w_p.shape
    batch = x.shape[0]
    in_dtype = x.dtype

    # ---- tile selection -------------------------------------------------
    b_pad8 = _round_up(batch, 8)
    # Cover the whole batch in one tile when it fits -> weights streamed once.
    tm = b_pad8 if b_pad8 <= 1024 else 512
    cap_k, cap_n = 2048, 512
    tk = _pick_tile(k_pad, cap_k)
    tn = _pick_tile(n_pad, cap_n)
    # Shrink within the VMEM budget.  Shrinking tk/tn does not change total HBM
    # bytes (only step count), so shrink those before tm (which re-streams the
    # weights once per batch tile).
    while _vmem_bytes(tm, tn, tk) > _VMEM_BUDGET:
        if tk > 128:
            cap_k = max(128, cap_k // 2)
            tk = _pick_tile(k_pad, cap_k)
        elif tn > 128:
            cap_n = max(128, cap_n // 2)
            tn = _pick_tile(n_pad, cap_n)
        elif tm > 8:
            tm = max(8, (tm // 2) // 8 * 8)
        else:
            break

    b_total = _round_up(batch, tm)

    # ---- per-forward input padding (x only; params were padded once) ----
    x_p = x.astype(jnp.float32)
    if (b_total, k_pad) != x.shape:
        x_p = jnp.pad(x_p, ((0, b_total - batch), (0, k_pad - in_features)))

    grid = (b_total // tm, n_pad // tn, k_pad // tk)

    out_p = pl.pallas_call(
        noisy_linear_kernel,
        out_shape=jax.ShapeDtypeStruct((b_total, n_pad), jnp.float32),
        grid_spec=pltpu.PrefetchScalarGridSpec(
            num_scalar_prefetch=0,
            grid=grid,
            in_specs=[
                pl.BlockSpec((tm, tk), lambda i, j, k: (i, k)),   # x
                pl.BlockSpec((tn, tk), lambda i, j, k: (j, k)),   # mu_weight
                pl.BlockSpec((tn, tk), lambda i, j, k: (j, k)),   # sigma_weight
                pl.BlockSpec((tn, tk), lambda i, j, k: (j, k)),   # epsilon_weight
                pl.BlockSpec((3, tn), lambda i, j, k: (0, j)),    # fused biases
            ],
            out_specs=pl.BlockSpec((tm, tn), lambda i, j, k: (i, j)),
        ),
        compiler_params=pltpu.CompilerParams(
            dimension_semantics=("parallel", "parallel", "arbitrary"),
            # Budget is <= 28 MiB; raise the scoped limit so v5e's 16 MiB
            # default does not force smaller tiles (40 MiB < v7x's 64 MiB).
            vmem_limit_bytes=40 * 1024 * 1024),
    )(x_p, mu_w_p, sig_w_p, eps_w_p, bias_p)

    return out_p[:batch, :out_features].astype(in_dtype)


if __name__ == "__main__":
    def run_case(seed, batch, in_features, out_features, sigma=0.017):
        key = jax.random.PRNGKey(seed)
        k_x, k_muw, k_mub, k_epsw, k_epsb = jax.random.split(key, 5)
        bound = (1.0 / in_features) ** 0.5

        # Mirror __init__ / _initialize_parameters / sample_noise.
        mu_weight = jax.random.uniform(k_muw, (out_features, in_features),
                                       minval=-bound, maxval=bound,
                                       dtype=jnp.float32)
        mu_bias = jax.random.uniform(k_mub, (out_features,),
                                     minval=-bound, maxval=bound,
                                     dtype=jnp.float32)
        sigma_weight = jnp.full((out_features, in_features), sigma, jnp.float32)
        sigma_bias = jnp.full((out_features,), sigma, jnp.float32)
        epsilon_weight = jax.random.normal(k_epsw, (out_features, in_features),
                                           dtype=jnp.float32)
        epsilon_bias = jax.random.normal(k_epsb, (out_features,),
                                         dtype=jnp.float32)
        x = jax.random.normal(k_x, (batch, in_features), dtype=jnp.float32)

        # Pad/stack once (init-time), then run the forward.
        params, dims = prepare_noisy_params(mu_weight, sigma_weight,
                                            epsilon_weight, mu_bias,
                                            sigma_bias, epsilon_bias)
        out = independent_noisy_forward(x, params, dims)
        out = jax.block_until_ready(out)

        # Pure-JAX reference (training-mode F.linear).
        w_ref = mu_weight + sigma_weight * epsilon_weight
        b_ref = mu_bias + sigma_bias * epsilon_bias
        ref = x @ w_ref.T + b_ref
        assert out.shape == (batch, out_features)
        assert jnp.allclose(out, ref, atol=1e-5, rtol=1e-5), \
            f"mismatch vs reference (case seed={seed})"

    # Small, module-consistent shapes: one lane-aligned, one that exercises
    # the 128/8 minimal padding path.
    run_case(seed=0, batch=8, in_features=32, out_features=64)
    run_case(seed=1, batch=5, in_features=40, out_features=72)

    print("KERNEL_OK")
</pallas_src>

<mosaic_0001>
module attributes {stable_mosaic.version = 11 : i64} {
  func.func @noisy_linear_kernel(%arg0: i32, %arg1: i32, %arg2: i32, %arg3: memref<8x128xf32, #tpu.memory_space<vmem>>, %arg4: memref<128x128xf32, #tpu.memory_space<vmem>>, %arg5: memref<128x128xf32, #tpu.memory_space<vmem>>, %arg6: memref<128x128xf32, #tpu.memory_space<vmem>>, %arg7: memref<3x128xf32, #tpu.memory_space<vmem>>, %arg8: memref<8x128xf32, #tpu.memory_space<vmem>>) attributes {dimension_semantics = [#tpu.dimension_semantics<parallel>, #tpu.dimension_semantics<parallel>, #tpu.dimension_semantics<arbitrary>], iteration_bounds = array<i64: 1, 1, 1>, scalar_prefetch = 0 : i64, scratch_operands = 0 : i64, tpu.core_type = #tpu.core_type<tc>, window_params = [{transform_indices = @transform_0, window_bounds = array<i64: 8, 128>}, {transform_indices = @transform_1, window_bounds = array<i64: 128, 128>}, {transform_indices = @transform_2, window_bounds = array<i64: 128, 128>}, {transform_indices = @transform_3, window_bounds = array<i64: 128, 128>}, {transform_indices = @transform_4, window_bounds = array<i64: 3, 128>}, {transform_indices = @transform_5, window_bounds = array<i64: 8, 128>}]} {
    %c0_i32 = arith.constant 0 : i32
    %0 = arith.cmpi eq, %arg2, %c0_i32 : i32
    %1 = arith.extui %0 : i1 to i32
    %c0_i32_0 = arith.constant 0 : i32
    %2 = arith.cmpi ne, %1, %c0_i32_0 : i32
    scf.if %2 {
      %cst_14 = arith.constant 0.000000e+00 : f32
      %16 = vector.broadcast %cst_14 : f32 to vector<8x128xf32>
      %c0_15 = arith.constant 0 : index
      %c0_16 = arith.constant 0 : index
      %17 = vector.load %arg8[%c0_15, %c0_16] : memref<8x128xf32, #tpu.memory_space<vmem>>, vector<8x128xf32>
      tpu.vector_store %arg8[%c0_15, %c0_16], %16 {strides = array<i32>} : memref<8x128xf32, #tpu.memory_space<vmem>>, vector<8x128xf32>,
    } else {
    }
    %c0 = arith.constant 0 : index
    %c0_1 = arith.constant 0 : index
    %3 = vector.load %arg4[%c0, %c0_1] : memref<128x128xf32, #tpu.memory_space<vmem>>, vector<128x128xf32>
    %c0_2 = arith.constant 0 : index
    %c0_3 = arith.constant 0 : index
    %4 = vector.load %arg5[%c0_2, %c0_3] : memref<128x128xf32, #tpu.memory_space<vmem>>, vector<128x128xf32>
    %c0_4 = arith.constant 0 : index
    %c0_5 = arith.constant 0 : index
    %5 = vector.load %arg6[%c0_4, %c0_5] : memref<128x128xf32, #tpu.memory_space<vmem>>, vector<128x128xf32>
    %6 = arith.mulf %4, %5 : vector<128x128xf32>
    %7 = arith.addf %3, %6 : vector<128x128xf32>
    %c0_6 = arith.constant 0 : index
    %c0_7 = arith.constant 0 : index
    %8 = vector.load %arg8[%c0_6, %c0_7] : memref<8x128xf32, #tpu.memory_space<vmem>>, vector<8x128xf32>
    %c0_8 = arith.constant 0 : index
    %c0_9 = arith.constant 0 : index
    %9 = vector.load %arg3[%c0_8, %c0_9] : memref<8x128xf32, #tpu.memory_space<vmem>>, vector<8x128xf32>
    %cst = arith.constant dense<0.000000e+00> : vector<8x128xf32>
    %10 = tpu.matmul %9, %7, %cst {dimension_numbers = #tpu.dot_dimension_numbers<[1], [1], [0], [0], [0, 0, 1, 0], [], []>} : vector<8x128xf32>, vector<128x128xf32>, vector<8x128xf32> -> vector<8x128xf32>
    %11 = arith.addf %8, %10 : vector<8x128xf32>
    %c0_10 = arith.constant 0 : index
    %c0_11 = arith.constant 0 : index
    %12 = vector.load %arg8[%c0_10, %c0_11] : memref<8x128xf32, #tpu.memory_space<vmem>>, vector<8x128xf32>
    tpu.vector_store %arg8[%c0_10, %c0_11], %11 {strides = array<i32>} : memref<8x128xf32, #tpu.memory_space<vmem>>, vector<8x128xf32>,
    %c0_i32_12 = arith.constant 0 : i32
    %13 = arith.cmpi eq, %arg2, %c0_i32_12 : i32
    %14 = arith.extui %13 : i1 to i32
    %c0_i32_13 = arith.constant 0 : i32
    %15 = arith.cmpi ne, %14, %c0_i32_13 : i32
    scf.if %15 {
      %c0_14 = arith.constant 0 : index
      %c0_15 = arith.constant 0 : index
      %16 = vector.load %arg8[%c0_14, %c0_15] : memref<8x128xf32, #tpu.memory_space<vmem>>, vector<8x128xf32>
      %c0_16 = arith.constant 0 : index
      %c0_17 = arith.constant 0 : index
      %17 = vector.load %arg7[%c0_16, %c0_17] : memref<3x128xf32, #tpu.memory_space<vmem>>, vector<1x128xf32>
      %c1 = arith.constant 1 : index
      %c0_18 = arith.constant 0 : index
      %18 = vector.load %arg7[%c1, %c0_18] : memref<3x128xf32, #tpu.memory_space<vmem>>, vector<1x128xf32>
      %c2 = arith.constant 2 : index
      %c0_19 = arith.constant 0 : index
      %19 = vector.load %arg7[%c2, %c0_19] : memref<3x128xf32, #tpu.memory_space<vmem>>, vector<1x128xf32>
      %20 = arith.mulf %18, %19 : vector<1x128xf32>
      %21 = arith.addf %17, %20 : vector<1x128xf32>
      %22 = vector.broadcast %21 : vector<1x128xf32> to vector<8x128xf32>
      %23 = arith.addf %16, %22 : vector<8x128xf32>
      %c0_20 = arith.constant 0 : index
      %c0_21 = arith.constant 0 : index
      %24 = vector.load %arg8[%c0_20, %c0_21] : memref<8x128xf32, #tpu.memory_space<vmem>>, vector<8x128xf32>
      tpu.vector_store %arg8[%c0_20, %c0_21], %23 {strides = array<i32>} : memref<8x128xf32, #tpu.memory_space<vmem>>, vector<8x128xf32>,
    } else {
    }
    return
  }
  func.func @transform_0(%arg0: i32, %arg1: i32, %arg2: i32) -> (i32, i32) {
    %c0_i32 = arith.constant 0 : i32
    return %arg0, %arg2 : i32, i32
  }
  func.func @transform_1(%arg0: i32, %arg1: i32, %arg2: i32) -> (i32, i32) {
    %c0_i32 = arith.constant 0 : i32
    return %arg1, %arg2 : i32, i32
  }
  func.func @transform_2(%arg0: i32, %arg1: i32, %arg2: i32) -> (i32, i32) {
    %c0_i32 = arith.constant 0 : i32
    return %arg1, %arg2 : i32, i32
  }
  func.func @transform_3(%arg0: i32, %arg1: i32, %arg2: i32) -> (i32, i32) {
    %c0_i32 = arith.constant 0 : i32
    return %arg1, %arg2 : i32, i32
  }
  func.func @transform_4(%arg0: i32, %arg1: i32, %arg2: i32) -> (i32, i32) {
    %c0_i32 = arith.constant 0 : i32
    %c0_i32_0 = arith.constant 0 : i32
    return %c0_i32, %arg1 : i32, i32
  }
  func.func @transform_5(%arg0: i32, %arg1: i32, %arg2: i32) -> (i32, i32) {
    %c0_i32 = arith.constant 0 : i32
    return %arg0, %arg1 : i32, i32
  }
}

</mosaic_0001>

<llo_original>
// kernel: tpu_custom_call.1
$region0: #{tpu_custom_call.1}
  #allocation0 [shape = 'u32[]', space=smem, size = 0x4, offset = 0x4, fixed_abs, tag = 'smem constant byte address 0x4 - core index']
  #allocation1 [shape = 'u32[144,128]{1,0:T(1,128)}', space=vmem, size = 0x12000, scoped, tag = 'internal scratch']
  %s0 = inlined_call_operand.hbm [shape: f32[8,128], index: 0, kind: input, shape index: {}]
  %s1 = inlined_call_operand.hbm [shape: f32[128,128], index: 1, kind: input, shape index: {}]
  %s2 = inlined_call_operand.hbm [shape: f32[128,128], index: 2, kind: input, shape index: {}]
  %s3 = inlined_call_operand.hbm [shape: f32[128,128], index: 3, kind: input, shape index: {}]
  %s4 = inlined_call_operand.vmem [shape: f32[3,128], index: 4, kind: input, shape index: {}]
  %s5 = inlined_call_operand.hbm [shape: f32[8,128], index: 5, kind: output, shape index: {}]
  %s6 = sld [smem:[#allocation0]]
  $region54: #{tpu_custom_call.1} parent=0
    _
  %s8 = ssub.s32 1, %s6
  %s9 = scalar_select 0, %s8, %s6
  $region1: #{tpu_custom_call.1} parent=0
    #allocation2 [shape = 'u8[4096]{0}', space=vmem, size = 0x1000, scoped, tag = 'input window, operand 0, single buffered']
    #allocation3 [shape = 's32[1]{0}', space=sflag, size = 0x4, scoped, tag = 'scoped memory for tpu_custom_call.1']
    #allocation4 [shape = 's32[1]{0}', space=sflag, size = 0x4, scoped, tag = 'scoped memory for tpu_custom_call.1']
    #allocation5 [shape = 'u8[65536]{0}', space=vmem, size = 0x10000, scoped, tag = 'input window, operand 1, single buffered']
    #allocation6 [shape = 's32[1]{0}', space=sflag, size = 0x4, scoped, tag = 'scoped memory for tpu_custom_call.1']
    #allocation7 [shape = 'u8[65536]{0}', space=vmem, size = 0x10000, scoped, tag = 'input window, operand 2, single buffered']
    #allocation8 [shape = 'u8[65536]{0}', space=vmem, size = 0x10000, scoped, tag = 'input window, operand 3, single buffered']
    #allocation9 [shape = 's32[1]{0}', space=sflag, size = 0x4, scoped, tag = 'scoped memory for tpu_custom_call.1']
    #allocation10 [shape = 'u8[4096]{0}', space=vmem, size = 0x1000, scoped, tag = 'output window, operand 0, single buffered']
    %10 = vsyncpa [#allocation3], 0
    %11 = vsyncpa [#allocation6], 0
    %12 = vsyncpa [#allocation9], 0
    %13 = vsyncpa [#allocation4], 0
    // Predicated region
    $region2: #{tpu_custom_call.1} parent=1 // pred_check
      _
    $region3: #{tpu_custom_call.1} parent=1 // pred_check_branch
      %15 = sbr.rel (0) target = $region5
    $region4: #{tpu_custom_call.1} parent=1 // pred_region
      %s17 = ssub.s32 128, 128
      %18 = vsyncadd [#allocation3], %s17
      %s20 = sshll.u32 [#allocation2], 4
      %s21 = int_to_ptr.vmem [resolvable:$true] %s20
      %23 = dma.hbm_to_vmem [thread:$0]  %s0, 128, %s21, [#allocation3]
    $region5: #{tpu_custom_call.1} parent=1 // pred_fallthru
      _
    // Predicated region
    $region6: #{tpu_custom_call.1} parent=1 // pred_check
      _
    $region7: #{tpu_custom_call.1} parent=1 // pred_check_branch
      %25 = sbr.rel (0) target = $region9
    $region8: #{tpu_custom_call.1} parent=1 // pred_region
      %s27 = ssub.s32 2048, 2048
      %28 = vsyncadd [#allocation6], %s27
      %s29 = sshll.u32 [#allocation5], 4
      %s30 = int_to_ptr.vmem [resolvable:$true] %s29
      %35 = dma.hbm_to_vmem [thread:$0]  %s1, 2048, %s30, [#allocation6], 128, 128, 8
    $region9: #{tpu_custom_call.1} parent=1 // pred_fallthru
      _
    // Predicated region
    $region10: #{tpu_custom_call.1} parent=1 // pred_check
      _
    $region11: #{tpu_custom_call.1} parent=1 // pred_check_branch
      %37 = sbr.rel (0) target = $region13
    $region12: #{tpu_custom_call.1} parent=1 // pred_region
      %s39 = ssub.s32 2048, 2048
      %40 = vsyncadd [#allocation6], %s39
      %s41 = sshll.u32 [#allocation7], 4
      %s42 = int_to_ptr.vmem [resolvable:$true] %s41
      %47 = dma.hbm_to_vmem [thread:$0]  %s2, 2048, %s42, [#allocation6], 128, 128, 8
    $region13: #{tpu_custom_call.1} parent=1 // pred_fallthru
      _
    // Predicated region
    $region14: #{tpu_custom_call.1} parent=1 // pred_check
      _
    $region15: #{tpu_custom_call.1} parent=1 // pred_check_branch
      %49 = sbr.rel (0) target = $region17
    $region16: #{tpu_custom_call.1} parent=1 // pred_region
      %s51 = ssub.s32 2048, 2048
      %52 = vsyncadd [#allocation9], %s51
      %s53 = sshll.u32 [#allocation8], 4
      %s54 = int_to_ptr.vmem [resolvable:$true] %s53
      %59 = dma.hbm_to_vmem [thread:$0]  %s3, 2048, %s54, [#allocation9], 128, 128, 8
    $region17: #{tpu_custom_call.1} parent=1 // pred_fallthru
      _
    // Predicated region
    $region18: #{tpu_custom_call.1} parent=1 // pred_check
      _
    $region19: #{tpu_custom_call.1} parent=1 // pred_check_branch
      %61 = sbr.rel (0) target = $region21
    $region20: #{tpu_custom_call.1} parent=1 // pred_region
      _
    $region21: #{tpu_custom_call.1} parent=1 // pred_fallthru
      _
    // Predicated region
    $region22: #{tpu_custom_call.1} parent=1 // pred_check
      _
    $region23: #{tpu_custom_call.1} parent=1 // pred_check_branch
      %63 = sbr.rel (0) target = $region25
    $region24: #{tpu_custom_call.1} parent=1 // pred_region
      %64 = dma.done [#allocation3], 128
    $region25: #{tpu_custom_call.1} parent=1 // pred_fallthru
      _
    // Predicated region
    $region26: #{tpu_custom_call.1} parent=1 // pred_check
      _
    $region27: #{tpu_custom_call.1} parent=1 // pred_check_branch
      %66 = sbr.rel (0) target = $region29
    $region28: #{tpu_custom_call.1} parent=1 // pred_region
      %67 = dma.done [#allocation6], 2048
    $region29: #{tpu_custom_call.1} parent=1 // pred_fallthru
      _
    // Predicated region
    $region30: #{tpu_custom_call.1} parent=1 // pred_check
      _
    $region31: #{tpu_custom_call.1} parent=1 // pred_check_branch
      %69 = sbr.rel (0) target = $region33
    $region32: #{tpu_custom_call.1} parent=1 // pred_region
      %70 = dma.done [#allocation6], 2048
    $region33: #{tpu_custom_call.1} parent=1 // pred_fallthru
      _
    // Predicated region
    $region34: #{tpu_custom_call.1} parent=1 // pred_check
      _
    $region35: #{tpu_custom_call.1} parent=1 // pred_check_branch
      %72 = sbr.rel (0) target = $region37
    $region36: #{tpu_custom_call.1} parent=1 // pred_region
      %73 = dma.done [#allocation9], 2048
    $region37: #{tpu_custom_call.1} parent=1 // pred_fallthru
      _
    %p74 = scmp.eq.s32.totalorder 0, 0
    // Predicated region
    $region38: #{tpu_custom_call.1} parent=1 // pred_check
      %p75 = pneg %p74
    $region39: #{tpu_custom_call.1} parent=1 // pred_check_branch
      %77 = sbr.rel (%p75) target = $region41
    $region40: #{tpu_custom_call.1} parent=1 // pred_region
      %78 = vst [vmem:[#allocation10] sm:$0xff] 0.0
    $region41: #{tpu_custom_call.1} parent=1 // pred_fallthru
      _
    %v79 = vld [vmem:[#allocation5] sm:$0xff]
    %v80 = vld [vmem:[#allocation5 + $0x8] sm:$0xff]
    %v81 = vld [vmem:[#allocation5 + $0x10] sm:$0xff]
    %v82 = vld [vmem:[#allocation5 + $0x18] sm:$0xff]
    %v83 = vld [vmem:[#allocation5 + $0x20] sm:$0xff]
    %v84 = vld [vmem:[#allocation5 + $0x28] sm:$0xff]
    %v85 = vld [vmem:[#allocation5 + $0x30] sm:$0xff]
    %v86 = vld [vmem:[#allocation5 + $0x38] sm:$0xff]
    %v87 = vld [vmem:[#allocation5 + $0x40] sm:$0xff]
    %v88 = vld [vmem:[#allocation5 + $0x48] sm:$0xff]
    %v89 = vld [vmem:[#allocation5 + $0x50] sm:$0xff]
    %v90 = vld [vmem:[#allocation5 + $0x58] sm:$0xff]
    %v91 = vld [vmem:[#allocation5 + $0x60] sm:$0xff]
    %v92 = vld [vmem:[#allocation5 + $0x68] sm:$0xff]
    %v93 = vld [vmem:[#allocation5 + $0x70] sm:$0xff]
    %v94 = vld [vmem:[#allocation5 + $0x78] sm:$0xff]
    %v95 = vld [vmem:[#allocation7] sm:$0xff]
    %v96 = vld [vmem:[#allocation7 + $0x8] sm:$0xff]
    %v97 = vld [vmem:[#allocation7 + $0x10] sm:$0xff]
    %v98 = vld [vmem:[#allocation7 + $0x18] sm:$0xff]
    %v99 = vld [vmem:[#allocation7 + $0x20] sm:$0xff]
    %v100 = vld [vmem:[#allocation7 + $0x28] sm:$0xff]
    %v101 = vld [vmem:[#allocation7 + $0x30] sm:$0xff]
    %v102 = vld [vmem:[#allocation7 + $0x38] sm:$0xff]
    %v103 = vld [vmem:[#allocation7 + $0x40] sm:$0xff]
    %v104 = vld [vmem:[#allocation7 + $0x48] sm:$0xff]
    %v105 = vld [vmem:[#allocation7 + $0x50] sm:$0xff]
    %v106 = vld [vmem:[#allocation7 + $0x58] sm:$0xff]
    %v107 = vld [vmem:[#allocation7 + $0x60] sm:$0xff]
    %v108 = vld [vmem:[#allocation7 + $0x68] sm:$0xff]
    %v109 = vld [vmem:[#allocation7 + $0x70] sm:$0xff]
    %v110 = vld [vmem:[#allocation7 + $0x78] sm:$0xff]
    %v111 = vld [vmem:[#allocation8] sm:$0xff]
    %v112 = vld [vmem:[#allocation8 + $0x8] sm:$0xff]
    %v113 = vld [vmem:[#allocation8 + $0x10] sm:$0xff]
    %v114 = vld [vmem:[#allocation8 + $0x18] sm:$0xff]
    %v115 = vld [vmem:[#allocation8 + $0x20] sm:$0xff]
    %v116 = vld [vmem:[#allocation8 + $0x28] sm:$0xff]
    %v117 = vld [vmem:[#allocation8 + $0x30] sm:$0xff]
    %v118 = vld [vmem:[#allocation8 + $0x38] sm:$0xff]
    %v119 = vld [vmem:[#allocation8 + $0x40] sm:$0xff]
    %v120 = vld [vmem:[#allocation8 + $0x48] sm:$0xff]
    %v121 = vld [vmem:[#allocation8 + $0x50] sm:$0xff]
    %v122 = vld [vmem:[#allocation8 + $0x58] sm:$0xff]
    %v123 = vld [vmem:[#allocation8 + $0x60] sm:$0xff]
    %v124 = vld [vmem:[#allocation8 + $0x68] sm:$0xff]
    %v125 = vld [vmem:[#allocation8 + $0x70] sm:$0xff]
    %v126 = vld [vmem:[#allocation8 + $0x78] sm:$0xff]
    %v127 = vmul.f32 %v95, %v111
    %v128 = vmul.f32 %v96, %v112
    %v129 = vmul.f32 %v97, %v113
    %v130 = vmul.f32 %v98, %v114
    %v131 = vmul.f32 %v99, %v115
    %v132 = vmul.f32 %v100, %v116
    %v133 = vmul.f32 %v101, %v117
    %v134 = vmul.f32 %v102, %v118
    %v135 = vmul.f32 %v103, %v119
    %v136 = vmul.f32 %v104, %v120
    %v137 = vmul.f32 %v105, %v121
    %v138 = vmul.f32 %v106, %v122
    %v139 = vmul.f32 %v107, %v123
    %v140 = vmul.f32 %v108, %v124
    %v141 = vmul.f32 %v109, %v125
    %v142 = vmul.f32 %v110, %v126
    %v143 = vadd.f32 %v79, %v127
    %v144 = vadd.f32 %v80, %v128
    %v145 = vadd.f32 %v81, %v129
    %v146 = vadd.f32 %v82, %v130
    %v147 = vadd.f32 %v83, %v131
    %v148 = vadd.f32 %v84, %v132
    %v149 = vadd.f32 %v85, %v133
    %v150 = vadd.f32 %v86, %v134
    %v151 = vadd.f32 %v87, %v135
    %v152 = vadd.f32 %v88, %v136
    %v153 = vadd.f32 %v89, %v137
    %v154 = vadd.f32 %v90, %v138
    %v155 = vadd.f32 %v91, %v139
    %v156 = vadd.f32 %v92, %v140
    %v157 = vadd.f32 %v93, %v141
    %v158 = vadd.f32 %v94, %v142
    %v159 = vld [vmem:[#allocation10] sm:$0xff]
    %v160 = vld [vmem:[#allocation2] sm:$0xff]
    %161 = vmatprep.subr.mxu0 0.0
    %162 = vmatpush1.xpose.msra.mxu0 %v143
    %163 = vmatprep.subr.mxu0 0.0
    %164 = vmatpush1.xpose.msra.mxu0 %v144
    %165 = vmatprep.subr.mxu0 0.0
    %166 = vmatpush1.xpose.msra.mxu0 %v145
    %167 = vmatprep.subr.mxu0 0.0
    %168 = vmatpush1.xpose.msra.mxu0 %v146
    %169 = vmatprep.subr.mxu0 0.0
    %170 = vmatpush1.xpose.msra.mxu0 %v147
    %171 = vmatprep.subr.mxu0 0.0
    %172 = vmatpush1.xpose.msra.mxu0 %v148
    %173 = vmatprep.subr.mxu0 0.0
    %174 = vmatpush1.xpose.msra.mxu0 %v149
    %175 = vmatprep.subr.mxu0 0.0
    %176 = vmatpush1.xpose.msra.mxu0 %v150
    %177 = vmatprep.subr.mxu0 0.0
    %178 = vmatpush1.xpose.msra.mxu0 %v151
    %179 = vmatprep.subr.mxu0 0.0
    %180 = vmatpush1.xpose.msra.mxu0 %v152
    %181 = vmatprep.subr.mxu0 0.0
    %182 = vmatpush1.xpose.msra.mxu0 %v153
    %183 = vmatprep.subr.mxu0 0.0
    %184 = vmatpush1.xpose.msra.mxu0 %v154
    %185 = vmatprep.subr.mxu0 0.0
    %186 = vmatpush1.xpose.msra.mxu0 %v155
    %187 = vmatprep.subr.mxu0 0.0
    %188 = vmatpush1.xpose.msra.mxu0 %v156
    %189 = vmatprep.subr.mxu0 0.0
    %190 = vmatpush1.xpose.msra.mxu0 %v157
    %191 = vmatprep.subr.mxu0 0.0
    %192 = vmatpush1.xpose.msra.mxu0 %v158
    %193 = vmatprep.subr.mxu0 0.0
    %194 = vmatpush1.xpose.msra.mxu0 0.0
    %195 = vmatprep.subr.mxu0 0.0
    %196 = vmatpush1.xpose.msra.mxu0 0.0
    %197 = vmatprep.subr.mxu0 0.0
    %198 = vmatpush1.xpose.msra.mxu0 0.0
    %199 = vmatprep.subr.mxu0 0.0
    %200 = vmatpush1.xpose.msra.mxu0 0.0
    %201 = vmatprep.subr.mxu0 0.0
    %202 = vmatpush1.xpose.msra.mxu0 0.0
    %203 = vmatprep.subr.mxu0 0.0
    %204 = vmatpush1.xpose.msra.mxu0 0.0
    %205 = vmatprep.subr.mxu0 0.0
    %206 = vmatpush1.xpose.msra.mxu0 0.0
    %207 = vmatprep.subr.mxu0 0.0
    %208 = vmatpush1.xpose.msra.mxu0 0.0
    %209 = vmatprep.subr.mxu0 0.0
    %210 = vmatpush1.xpose.msra.mxu0 0.0
    %211 = vmatprep.subr.mxu0 0.0
    %212 = vmatpush1.xpose.msra.mxu0 0.0
    %213 = vmatprep.subr.mxu0 0.0
    %214 = vmatpush1.xpose.msra.mxu0 0.0
    %215 = vmatprep.subr.mxu0 0.0
    %216 = vmatpush1.xpose.msra.mxu0 0.0
    %217 = vmatprep.subr.mxu0 0.0
    %218 = vmatpush1.xpose.msra.mxu0 0.0
    %219 = vmatprep.subr.mxu0 0.0
    %220 = vmatpush1.xpose.msra.mxu0 0.0
    %221 = vmatprep.subr.mxu0 0.0
    %222 = vmatpush1.xpose.msra.mxu0 0.0
    %223 = vmatprep.subr.mxu0 0.0
    %224 = vmatpush1.xpose.msra.mxu0 0.0
    %225 = vmatprep.mubr.f32.mxu0 0.0
    %226 = vmatmul.mubr.f32.gmra.mrb[0].mxu0 %v160
    %v227 = vpop.f32.mrb[0].mxu0
    %v228 = vadd.f32 0.0, %v227
    %v229 = vpop.f32.mrb[0].mxu0
    %230 = vdwg.mxu0
    %v231 = vadd.f32 %v159, %v228
    %232 = vst [vmem:[#allocation10] sm:$0xff] %v231
    // Predicated region
    $region42: #{tpu_custom_call.1} parent=1 // pred_check
      %p233 = pneg %p74
    $region43: #{tpu_custom_call.1} parent=1 // pred_check_branch
      %235 = sbr.rel (%p233) target = $region45
    $region44: #{tpu_custom_call.1} parent=1 // pred_region
      %v236 = vld [vmem:[#allocation10] sm:$0xff]
      %v237 = vld [vmem:[%s4] sm:$0x1]
      %v238 = vld [vmem:[%s4 + $0x1] sm:$0x1]
      %v239 = vld [vmem:[%s4 + $0x2] sm:$0x1]
      %v240 = vmul.f32 %v238, %v239
      %v241 = vadd.f32 %v237, %v240
      %v242 = vlaneseq
      %v243 = vshrl.u32 %v242, 7
      %v244 = vsub.s32 0, %v243
      %v245 = vrot.slane %v241, %v244
      %v246 = vadd.f32 %v236, %v245
      %247 = vst [vmem:[#allocation10] sm:$0xff] %v246
    $region45: #{tpu_custom_call.1} parent=1 // pred_fallthru
      _
    // Predicated region
    $region46: #{tpu_custom_call.1} parent=1 // pred_check
      _
    $region47: #{tpu_custom_call.1} parent=1 // pred_check_branch
      %249 = sbr.rel (0) target = $region49
    $region48: #{tpu_custom_call.1} parent=1 // pred_region
      %s251 = ssub.s32 128, 128
      %252 = vsyncadd [#allocation4], %s251
      %s254 = sshll.u32 [#allocation10], 4
      %s255 = int_to_ptr.vmem [resolvable:$true] %s254
      %257 = dma.vmem_to_hbm [thread:$0]  %s255, 128, %s5, [#allocation4]
    $region49: #{tpu_custom_call.1} parent=1 // pred_fallthru
      _
    // Predicated region
    $region50: #{tpu_custom_call.1} parent=1 // pred_check
      _
    $region51: #{tpu_custom_call.1} parent=1 // pred_check_branch
      %259 = sbr.rel (0) target = $region53
    $region52: #{tpu_custom_call.1} parent=1 // pred_region
      %260 = dma.done [#allocation4], 128
    $region53: #{tpu_custom_call.1} parent=1 // pred_fallthru
      _
    %261 = vsyncpa [#allocation3], 1
    %262 = vsyncpa [#allocation6], 1
    %263 = vsyncpa [#allocation9], 1
    %264 = vsyncpa [#allocation4], 1

</llo_original>
